<compile_context>
chip_gen: v7x
topology: tpu7x:2x2x1
jax: 0.10.0
libtpu: 0.0.40
codegen_flags: <defaults>
</compile_context>

<pallas_src>
import functools
import math

import numpy as np
import jax
import jax.numpy as jnp
from jax.experimental import pallas as pl
from jax.experimental.pallas import tpu as pltpu


SB_IN = 66            # sb_in_plane
REDUCE_R = 2          # self.reduce_r
NUM_SB = SB_IN - 2    # 64  (== valid Conv1d length: 66 - 3 + 1)


def _adaptive_bins(length, out_size):
    """PyTorch AdaptiveAvgPool bin boundaries."""
    return [(int(math.floor(i * length / out_size)),
             int(math.ceil((i + 1) * length / out_size)))
            for i in range(out_size)]


@functools.lru_cache(maxsize=None)
def _pool_matrix_T_np(h, w, r):
    """Per-sample (h*w, r*r) adaptive-avg-pool matrix (transposed): applied as
    y(66, h*w) @ ptT(h*w, r*r) -> pooled(66, r*r)."""
    pt = np.zeros((h * w, r * r), np.float32)
    hb, wb = _adaptive_bins(h, r), _adaptive_bins(w, r)
    for i, (h0, h1) in enumerate(hb):
        for j, (w0, w1) in enumerate(wb):
            inv = 1.0 / ((h1 - h0) * (w1 - w0))
            for hh in range(h0, h1):
                for ww in range(w0, w1):
                    pt[hh * w + ww, i * r + j] = inv
    return pt


def _choose_nb(n):
    """Small per-step batch block: keeps VMEM tiny, keeps the per-sample pool
    matmul 100% useful, and leaves >= 2 grid steps per v7x TensorCore whenever
    the batch allows.  (Single-TC v5e/v6e only pay ~0.35 us per extra step,
    which is hidden under the per-step x DMA for nb >= ~4.)"""
    for nb in (8, 4, 2):
        if n % nb == 0 and n // nb >= 4:
            return nb
    return 1


# ----------------------------- Pallas kernel ---------------------------------
def spatial_bias_kernel(x_ref, w1_ref, b1_ref, ptT_ref, wcT_ref, bc_ref, o_ref):
    # x_ref   : (nb, C, H*W)  bf16   native layout: channels on sublanes, pixels on lanes
    # w1_ref  : (66, C)       bf16   folded 1x1-conv + BN weight
    # b1_ref  : (66, 1)       f32    folded BN shift
    # ptT_ref : (H*W, 4)      f32    per-sample adaptive-avg-pool matrix (transposed)
    # wcT_ref : (3, 4, 4)     f32    Conv1d taps, wcT[k, p, q] = wc[q, p, k]
    # bc_ref  : (1, 4)        f32    Conv1d bias
    # o_ref   : (nb, 64, 4)   f32    already in final (64, 2*2) layout per sample
    nb = x_ref.shape[0]
    for b in range(nb):                                   # static, nb <= 8
        # 1x1 conv (+ folded BN) + ReLU on the native (C, H*W) tile: one
        # bf16 MXU matmul, lane-dense (H*W lanes) intermediate.
        y = jnp.dot(w1_ref[...], x_ref[b],
                    preferred_element_type=jnp.float32)    # (66, H*W) f32
        y = jnp.maximum(y + b1_ref[...], 0.0)

        # AdaptiveAvgPool2d(2) is linear -> one per-sample matmul.
        pooled = jnp.dot(y, ptT_ref[...],
                         preferred_element_type=jnp.float32)  # (66, 4)

        # Conv1d(4, 4, 3, valid) over the 66-channel sublane axis: three
        # shifted tap matmuls (tiny (64,4)@(4,4), fully hidden under the
        # sample matmul / DMA; lane-concat fusion into one matmul is a
        # second-order win, kept unfused for lowering robustness).
        acc = bc_ref[...] + jnp.dot(pooled[0:NUM_SB], wcT_ref[0],
                                    preferred_element_type=jnp.float32)
        acc = acc + jnp.dot(pooled[1:NUM_SB + 1], wcT_ref[1],
                            preferred_element_type=jnp.float32)
        acc = acc + jnp.dot(pooled[2:NUM_SB + 2], wcT_ref[2],
                            preferred_element_type=jnp.float32)
        o_ref[b] = acc                                     # (64, 4)


# ----------------------------- wrapper ----------------------------------------
def spatial_bias(x, params):
    n, c, h, w = x.shape
    # The PyTorch forward's .squeeze()/.permute require batch >= 2.
    assert n >= 2, "Spatial_bias forward requires batch >= 2"
    r, sb_in, num_sb = REDUCE_R, SB_IN, NUM_SB
    hw = h * w

    nb = _choose_nb(n)
    g = n // nb

    # Native layout, free reshape only (no transpose); bf16 halves kernel DMA.
    x3 = x.reshape(n, c, hw).astype(jnp.bfloat16)          # (N, C, H*W)
    w1 = params["w1f"].astype(jnp.bfloat16)                # (66, C)
    b1 = params["b1"].reshape(sb_in, 1)                    # (66, 1) f32
    ptT = jnp.asarray(_pool_matrix_T_np(h, w, r))          # (H*W, 4) f32, cached
    wcT = jnp.transpose(params["wc"], (2, 1, 0))           # (3, 4, 4): wc[q,p,k]->[k,p,q]
    bc = params["bc"].reshape(1, r * r)                    # (1, 4)

    out = pl.pallas_call(
        spatial_bias_kernel,
        out_shape=jax.ShapeDtypeStruct((n, num_sb, r * r), jnp.float32),
        grid_spec=pltpu.PrefetchScalarGridSpec(
            num_scalar_prefetch=0,
            grid=(g,),
            in_specs=[
                pl.BlockSpec((nb, c, hw), lambda i: (i, 0, 0)),
                pl.BlockSpec((sb_in, c), lambda i: (0, 0)),
                pl.BlockSpec((sb_in, 1), lambda i: (0, 0)),
                pl.BlockSpec((hw, r * r), lambda i: (0, 0)),
                pl.BlockSpec((3, r * r, r * r), lambda i: (0, 0, 0)),
                pl.BlockSpec((1, r * r), lambda i: (0, 0)),
            ],
            out_specs=pl.BlockSpec((nb, num_sb, r * r), lambda i: (i, 0, 0)),
        ),
        compiler_params=pltpu.CompilerParams(
            dimension_semantics=("parallel",)),
    )(x3, w1, b1, ptT, wcT, bc)

    # (N, 64, 4) is already channel-major / spatial-minor -> free reshape.
    return out.reshape(n, num_sb, r, r)


# ----------------------------- params / reference -----------------------------
def make_params(key, channel, eps=1e-5):
    ks = jax.random.split(key, 7)
    # Conv2d(channel, 66, 1, bias=False)
    w1 = 0.2 * jax.random.normal(ks[0], (SB_IN, channel), jnp.float32)
    # BatchNorm2d(66), evaluated with running stats (inference mode)
    gamma = 1.0 + 0.1 * jax.random.normal(ks[1], (SB_IN,), jnp.float32)
    beta = 0.1 * jax.random.normal(ks[2], (SB_IN,), jnp.float32)
    mean = 0.1 * jax.random.normal(ks[3], (SB_IN,), jnp.float32)
    var = jax.random.uniform(ks[4], (SB_IN,), jnp.float32, minval=0.5, maxval=1.5)
    # Conv1d(4, 4, 3)  weight (out, in, k) and bias
    wc = 0.3 * jax.random.normal(ks[5], (REDUCE_R ** 2, REDUCE_R ** 2, 3), jnp.float32)
    bc = 0.1 * jax.random.normal(ks[6], (REDUCE_R ** 2,), jnp.float32)

    scale = gamma / jnp.sqrt(var + eps)            # fold BN into the 1x1 conv
    return {"w1f": scale[:, None] * w1, "b1": beta - mean * scale,
            "wc": wc, "bc": bc}


def spatial_bias_ref(x, p):
    # Plain-JAX f32 reference mirroring the PyTorch forward (eval-mode BN folded).
    n, c, h, w = x.shape
    r, num_sb = REDUCE_R, NUM_SB
    y = jnp.einsum("oc,nchw->nohw", p["w1f"], x) + p["b1"][None, :, None, None]
    y = jnp.maximum(y, 0.0)
    hb, wb = _adaptive_bins(h, r), _adaptive_bins(w, r)
    pooled = jnp.stack(
        [jnp.stack([y[:, :, h0:h1, w0:w1].mean(axis=(2, 3)) for (w0, w1) in wb],
                   axis=-1) for (h0, h1) in hb], axis=-2)        # (n, 66, r, r)
    t = pooled.reshape(n, SB_IN, r * r).transpose(0, 2, 1)       # (n, 4, 66)
    out = p["bc"][None, :, None]
    for k in range(3):
        out = out + jnp.einsum("qp,nps->nqs", p["wc"][:, :, k],
                               t[:, :, k:k + num_sb])            # (n, 4, 64)
    return out.transpose(0, 2, 1).reshape(n, num_sb, r, r)


# ----------------------------- main --------------------------------------------
if __name__ == "__main__":
    N, C, H, W = 2, 64, 16, 16
    key = jax.random.PRNGKey(0)
    kx, kp = jax.random.split(key)
    x = jax.random.normal(kx, (N, C, H, W), jnp.float32)
    params = make_params(kp, C)

    fwd = jax.jit(spatial_bias)          # host-side prep runs at trace time
    out = jax.block_until_ready(fwd(x, params))
    ref = spatial_bias_ref(x, params)

    assert out.shape == (N, NUM_SB, REDUCE_R, REDUCE_R)
    # bf16 input/weight DMA (perf review item 2) -> compare against the f32
    # reference with a correspondingly loosened tolerance.
    assert jnp.allclose(out, ref, atol=2e-2, rtol=2e-2), "mismatch vs JAX reference"

    print("KERNEL_OK")
</pallas_src>

<mosaic_0001>
module attributes {stable_mosaic.version = 11 : i64} {
  func.func @spatial_bias_kernel(%arg0: i32, %arg1: memref<1x64x256xbf16, #tpu.memory_space<vmem>>, %arg2: memref<66x64xbf16, #tpu.memory_space<vmem>>, %arg3: memref<66x1xf32, #tpu.memory_space<vmem>>, %arg4: memref<256x4xf32, #tpu.memory_space<vmem>>, %arg5: memref<3x4x4xf32, #tpu.memory_space<vmem>>, %arg6: memref<1x4xf32, #tpu.memory_space<vmem>>, %arg7: memref<1x64x4xf32, #tpu.memory_space<vmem>>) attributes {dimension_semantics = [#tpu.dimension_semantics<parallel>], iteration_bounds = array<i64: 2>, scalar_prefetch = 0 : i64, scratch_operands = 0 : i64, tpu.core_type = #tpu.core_type<tc>, window_params = [{transform_indices = @transform_0, window_bounds = array<i64: 1, 64, 256>}, {pipeline_mode = #tpu.pipeline_mode<synchronous>, transform_indices = @transform_1, window_bounds = array<i64: 66, 64>}, {pipeline_mode = #tpu.pipeline_mode<synchronous>, transform_indices = @transform_2, window_bounds = array<i64: 66, 1>}, {pipeline_mode = #tpu.pipeline_mode<synchronous>, transform_indices = @transform_3, window_bounds = array<i64: 256, 4>}, {pipeline_mode = #tpu.pipeline_mode<synchronous>, transform_indices = @transform_4, window_bounds = array<i64: 3, 4, 4>}, {pipeline_mode = #tpu.pipeline_mode<synchronous>, transform_indices = @transform_5, window_bounds = array<i64: 1, 4>}, {transform_indices = @transform_6, window_bounds = array<i64: 1, 64, 4>}]} {
    %c0 = arith.constant 0 : index
    %c0_0 = arith.constant 0 : index
    %0 = vector.load %arg2[%c0, %c0_0] : memref<66x64xbf16, #tpu.memory_space<vmem>>, vector<66x64xbf16>
    %c0_1 = arith.constant 0 : index
    %c0_2 = arith.constant 0 : index
    %c0_3 = arith.constant 0 : index
    %1 = vector.load %arg1[%c0_1, %c0_2, %c0_3] : memref<1x64x256xbf16, #tpu.memory_space<vmem>>, vector<1x64x256xbf16>
    %2 = vector.shape_cast %1 : vector<1x64x256xbf16> to vector<64x256xbf16>
    %cst = arith.constant dense<0.000000e+00> : vector<66x256xf32>
    %3 = tpu.matmul %0, %2, %cst {dimension_numbers = #tpu.dot_dimension_numbers<[1], [0], [0], [1], [0, 0, 1, 1], [], []>} : vector<66x64xbf16>, vector<64x256xbf16>, vector<66x256xf32> -> vector<66x256xf32>
    %c0_4 = arith.constant 0 : index
    %c0_5 = arith.constant 0 : index
    %4 = vector.load %arg3[%c0_4, %c0_5] : memref<66x1xf32, #tpu.memory_space<vmem>>, vector<66x1xf32>
    %5 = vector.broadcast %4 : vector<66x1xf32> to vector<66x256xf32>
    %6 = arith.addf %3, %5 : vector<66x256xf32>
    %cst_6 = arith.constant 0.000000e+00 : f32
    %7 = vector.broadcast %cst_6 : f32 to vector<66x256xf32>
    %8 = arith.maximumf %6, %7 : vector<66x256xf32>
    %c0_7 = arith.constant 0 : index
    %c0_8 = arith.constant 0 : index
    %9 = vector.load %arg4[%c0_7, %c0_8] : memref<256x4xf32, #tpu.memory_space<vmem>>, vector<256x4xf32>
    %cst_9 = arith.constant dense<0.000000e+00> : vector<66x4xf32>
    %10 = tpu.matmul %8, %9, %cst_9 {dimension_numbers = #tpu.dot_dimension_numbers<[1], [0], [0], [1], [0, 0, 1, 1], [], []>} : vector<66x256xf32>, vector<256x4xf32>, vector<66x4xf32> -> vector<66x4xf32>
    %c0_10 = arith.constant 0 : index
    %c0_11 = arith.constant 0 : index
    %11 = vector.load %arg6[%c0_10, %c0_11] : memref<1x4xf32, #tpu.memory_space<vmem>>, vector<1x4xf32>
    %12 = vector.extract_strided_slice %10 {offsets = [0, 0], sizes = [64, 4], strides = [1, 1]} : vector<66x4xf32> to vector<64x4xf32>
    %c0_12 = arith.constant 0 : index
    %c0_13 = arith.constant 0 : index
    %c0_14 = arith.constant 0 : index
    %13 = vector.load %arg5[%c0_12, %c0_13, %c0_14] : memref<3x4x4xf32, #tpu.memory_space<vmem>>, vector<1x4x4xf32>
    %14 = vector.shape_cast %13 : vector<1x4x4xf32> to vector<4x4xf32>
    %cst_15 = arith.constant dense<0.000000e+00> : vector<64x4xf32>
    %15 = tpu.matmul %12, %14, %cst_15 {dimension_numbers = #tpu.dot_dimension_numbers<[1], [0], [0], [1], [0, 0, 1, 1], [], []>} : vector<64x4xf32>, vector<4x4xf32>, vector<64x4xf32> -> vector<64x4xf32>
    %16 = vector.broadcast %11 : vector<1x4xf32> to vector<64x4xf32>
    %17 = arith.addf %16, %15 : vector<64x4xf32>
    %18 = vector.extract_strided_slice %10 {offsets = [1, 0], sizes = [64, 4], strides = [1, 1]} : vector<66x4xf32> to vector<64x4xf32>
    %c1 = arith.constant 1 : index
    %c0_16 = arith.constant 0 : index
    %c0_17 = arith.constant 0 : index
    %19 = vector.load %arg5[%c1, %c0_16, %c0_17] : memref<3x4x4xf32, #tpu.memory_space<vmem>>, vector<1x4x4xf32>
    %20 = vector.shape_cast %19 : vector<1x4x4xf32> to vector<4x4xf32>
    %cst_18 = arith.constant dense<0.000000e+00> : vector<64x4xf32>
    %21 = tpu.matmul %18, %20, %cst_18 {dimension_numbers = #tpu.dot_dimension_numbers<[1], [0], [0], [1], [0, 0, 1, 1], [], []>} : vector<64x4xf32>, vector<4x4xf32>, vector<64x4xf32> -> vector<64x4xf32>
    %22 = arith.addf %17, %21 : vector<64x4xf32>
    %23 = vector.extract_strided_slice %10 {offsets = [2, 0], sizes = [64, 4], strides = [1, 1]} : vector<66x4xf32> to vector<64x4xf32>
    %c2 = arith.constant 2 : index
    %c0_19 = arith.constant 0 : index
    %c0_20 = arith.constant 0 : index
    %24 = vector.load %arg5[%c2, %c0_19, %c0_20] : memref<3x4x4xf32, #tpu.memory_space<vmem>>, vector<1x4x4xf32>
    %25 = vector.shape_cast %24 : vector<1x4x4xf32> to vector<4x4xf32>
    %cst_21 = arith.constant dense<0.000000e+00> : vector<64x4xf32>
    %26 = tpu.matmul %23, %25, %cst_21 {dimension_numbers = #tpu.dot_dimension_numbers<[1], [0], [0], [1], [0, 0, 1, 1], [], []>} : vector<64x4xf32>, vector<4x4xf32>, vector<64x4xf32> -> vector<64x4xf32>
    %27 = arith.addf %22, %26 : vector<64x4xf32>
    %c0_22 = arith.constant 0 : index
    %c0_23 = arith.constant 0 : index
    %c0_24 = arith.constant 0 : index
    %28 = vector.load %arg7[%c0_22, %c0_23, %c0_24] : memref<1x64x4xf32, #tpu.memory_space<vmem>>, vector<1x64x4xf32>
    %29 = vector.shape_cast %28 : vector<1x64x4xf32> to vector<64x4xf32>
    %30 = vector.shape_cast %27 : vector<64x4xf32> to vector<1x64x4xf32>
    tpu.vector_store %arg7[%c0_22, %c0_23, %c0_24], %30 {strides = array<i32>} : memref<1x64x4xf32, #tpu.memory_space<vmem>>, vector<1x64x4xf32>,
    return
  }
  func.func @transform_0(%arg0: i32) -> (i32, i32, i32) {
    %c0_i32 = arith.constant 0 : i32
    %c0_i32_0 = arith.constant 0 : i32
    %c0_i32_1 = arith.constant 0 : i32
    return %arg0, %c0_i32, %c0_i32_0 : i32, i32, i32
  }
  func.func @transform_1(%arg0: i32) -> (i32, i32) {
    %c0_i32 = arith.constant 0 : i32
    %c0_i32_0 = arith.constant 0 : i32
    %c0_i32_1 = arith.constant 0 : i32
    return %c0_i32, %c0_i32_0 : i32, i32
  }
  func.func @transform_2(%arg0: i32) -> (i32, i32) {
    %c0_i32 = arith.constant 0 : i32
    %c0_i32_0 = arith.constant 0 : i32
    %c0_i32_1 = arith.constant 0 : i32
    return %c0_i32, %c0_i32_0 : i32, i32
  }
  func.func @transform_3(%arg0: i32) -> (i32, i32) {
    %c0_i32 = arith.constant 0 : i32
    %c0_i32_0 = arith.constant 0 : i32
    %c0_i32_1 = arith.constant 0 : i32
    return %c0_i32, %c0_i32_0 : i32, i32
  }
  func.func @transform_4(%arg0: i32) -> (i32, i32, i32) {
    %c0_i32 = arith.constant 0 : i32
    %c0_i32_0 = arith.constant 0 : i32
    %c0_i32_1 = arith.constant 0 : i32
    %c0_i32_2 = arith.constant 0 : i32
    return %c0_i32, %c0_i32_0, %c0_i32_1 : i32, i32, i32
  }
  func.func @transform_5(%arg0: i32) -> (i32, i32) {
    %c0_i32 = arith.constant 0 : i32
    %c0_i32_0 = arith.constant 0 : i32
    %c0_i32_1 = arith.constant 0 : i32
    return %c0_i32, %c0_i32_0 : i32, i32
  }
  func.func @transform_6(%arg0: i32) -> (i32, i32, i32) {
    %c0_i32 = arith.constant 0 : i32
    %c0_i32_0 = arith.constant 0 : i32
    %c0_i32_1 = arith.constant 0 : i32
    return %arg0, %c0_i32, %c0_i32_0 : i32, i32, i32
  }
}

</mosaic_0001>

<llo_original>
// kernel: spatial_bias.1
$region0: #{spatial_bias.1}
  #allocation0 [shape = 'u32[]', space=smem, size = 0x4, offset = 0x4, fixed_abs, tag = 'smem constant byte address 0x4 - core index']
  #allocation1 [shape = 'u32[144,128]{1,0:T(1,128)}', space=vmem, size = 0x12000, scoped, tag = 'internal scratch']
  %s0 = inlined_call_operand.vmem [shape: bf16[2,64,256], index: 0, kind: input, shape index: {}]
  %s1 = inlined_call_operand.vmem [shape: bf16[66,64], index: 1, kind: input, shape index: {}]
  %s2 = inlined_call_operand.vmem [shape: f32[66,1], index: 2, kind: input, shape index: {}]
  %s3 = inlined_call_operand.vmem [shape: f32[256,4], index: 3, kind: input, shape index: {}]
  %s4 = inlined_call_operand.vmem [shape: f32[3,4,4], index: 4, kind: input, shape index: {}]
  %s5 = inlined_call_operand.vmem [shape: f32[1,4], index: 5, kind: input, shape index: {}]
  %s6 = inlined_call_operand.vmem [shape: f32[2,64,4], index: 6, kind: output, shape index: {}]
  %s7 = sld [smem:[#allocation0]]
  $region57: #{spatial_bias.1} parent=0
    _
  %s9 = ssub.s32 1, %s7
  %s10 = scalar_select 0, %s9, %s7
  loop: start=0, step=1, limit=4
  $region2: #{spatial_bias.1} parent=0 // loop_pre_header
    _
  $region3: #{spatial_bias.1} parent=0 // loop_header
    %s12 = sphi 0, %s16
    %p13 = scmp.ge.s32.totalorder %s12, 4
    %s22 = sphi 0, %s24
    %s25 = sphi 0, %s22
    %s26 = sphi 0, %s25
    %s42 = sphi 0, %s26
    %s46 = sphi 0, %s46
    %s48 = sphi 0, %s46
    %s49 = sphi 0, %s48
    %s63 = sphi 0, %s49
    %s67 = sphi 0, %s67
    %s69 = sphi 0, %s67
    %s70 = sphi 0, %s69
    %s84 = sphi 0, %s70
    %s88 = sphi 0, %s88
    %s90 = sphi 0, %s88
    %s91 = sphi 0, %s90
    %s105 = sphi 0, %s91
    %s109 = sphi 0, %s109
    %s111 = sphi 0, %s109
    %s112 = sphi 0, %s111
    %s126 = sphi 0, %s112
    %s130 = sphi 0, %s130
    %s132 = sphi 0, %s130
    %s133 = sphi 0, %s132
    %s147 = sphi 0, %s133
    %s153 = sphi 0, %s155
    %s156 = sphi 0, %s153
    %s157 = sphi 0, %s156
    %s173 = sphi 0, %s157
  $region4: #{spatial_bias.1} parent=0 // loop_header_branch
    %15 = sbr.rel (%p13) target = $region8
  $region5: #{spatial_bias.1} parent=0 // loop_body
    %s17 = ssub.s32 %s12, 1
    %s18 = ssub.s32 %s12, 2
    %s19 = sadd.s32 %s12, 1
    %s20 = ssub.s32 %s12, %s19
    %p21 = scmp.eq.s32.totalorder %s20, 0
    %s23 = sadd.s32 %s22, 1
    %s24 = scalar_select %p21, %s22, %s23
    %p27 = pneg %p21
    %p28 = scmp.eq.s32.totalorder %s12, 1
    %p29 = por %p27, %p28
    %p30 = scmp.ne.s32.totalorder %s22, %s25
    %p31 = scmp.eq.s32.totalorder %s12, 0
    %p32 = por %p30, %p31
    %p33 = scmp.ne.s32.totalorder %s22, %s25
    %p34 = scmp.eq.s32.totalorder %s17, 1
    %p35 = por %p33, %p34
    %p36 = scmp.ne.s32.totalorder %s25, %s26
    %p37 = scmp.eq.s32.totalorder %s17, 0
    %p38 = por %p36, %p37
    %p39 = scmp.ne.s32.totalorder %s25, %s26
    %p40 = scmp.eq.s32.totalorder %s18, 1
    %p41 = por %p39, %p40
    %p43 = scmp.ne.s32.totalorder %s26, %s42
    %p44 = scmp.eq.s32.totalorder %s18, 0
    %p45 = por %p43, %p44
    %s47 = sadd.s32 %s46, 1
    %p50 = scmp.eq.s32.totalorder %s12, 1
    %p51 = scmp.ne.s32.totalorder %s46, %s48
    %p52 = scmp.eq.s32.totalorder %s12, 0
    %p53 = por %p51, %p52
    %p54 = scmp.ne.s32.totalorder %s46, %s48
    %p55 = scmp.eq.s32.totalorder %s17, 1
    %p56 = por %p54, %p55
    %p57 = scmp.ne.s32.totalorder %s48, %s49
    %p58 = scmp.eq.s32.totalorder %s17, 0
    %p59 = por %p57, %p58
    %p60 = scmp.ne.s32.totalorder %s48, %s49
    %p61 = scmp.eq.s32.totalorder %s18, 1
    %p62 = por %p60, %p61
    %p64 = scmp.ne.s32.totalorder %s49, %s63
    %p65 = scmp.eq.s32.totalorder %s18, 0
    %p66 = por %p64, %p65
    %s68 = sadd.s32 %s67, 1
    %p71 = scmp.eq.s32.totalorder %s12, 1
    %p72 = scmp.ne.s32.totalorder %s67, %s69
    %p73 = scmp.eq.s32.totalorder %s12, 0
    %p74 = por %p72, %p73
    %p75 = scmp.ne.s32.totalorder %s67, %s69
    %p76 = scmp.eq.s32.totalorder %s17, 1
    %p77 = por %p75, %p76
    %p78 = scmp.ne.s32.totalorder %s69, %s70
    %p79 = scmp.eq.s32.totalorder %s17, 0
    %p80 = por %p78, %p79
    %p81 = scmp.ne.s32.totalorder %s69, %s70
    %p82 = scmp.eq.s32.totalorder %s18, 1
    %p83 = por %p81, %p82
    %p85 = scmp.ne.s32.totalorder %s70, %s84
    %p86 = scmp.eq.s32.totalorder %s18, 0
    %p87 = por %p85, %p86
    %s89 = sadd.s32 %s88, 1
    %p92 = scmp.eq.s32.totalorder %s12, 1
    %p93 = scmp.ne.s32.totalorder %s88, %s90
    %p94 = scmp.eq.s32.totalorder %s12, 0
    %p95 = por %p93, %p94
    %p96 = scmp.ne.s32.totalorder %s88, %s90
    %p97 = scmp.eq.s32.totalorder %s17, 1
    %p98 = por %p96, %p97
    %p99 = scmp.ne.s32.totalorder %s90, %s91
    %p100 = scmp.eq.s32.totalorder %s17, 0
    %p101 = por %p99, %p100
    %p102 = scmp.ne.s32.totalorder %s90, %s91
    %p103 = scmp.eq.s32.totalorder %s18, 1
    %p104 = por %p102, %p103
    %p106 = scmp.ne.s32.totalorder %s91, %s105
    %p107 = scmp.eq.s32.totalorder %s18, 0
    %p108 = por %p106, %p107
    %s110 = sadd.s32 %s109, 1
    %p113 = scmp.eq.s32.totalorder %s12, 1
    %p114 = scmp.ne.s32.totalorder %s109, %s111
    %p115 = scmp.eq.s32.totalorder %s12, 0
    %p116 = por %p114, %p115
    %p117 = scmp.ne.s32.totalorder %s109, %s111
    %p118 = scmp.eq.s32.totalorder %s17, 1
    %p119 = por %p117, %p118
    %p120 = scmp.ne.s32.totalorder %s111, %s112
    %p121 = scmp.eq.s32.totalorder %s17, 0
    %p122 = por %p120, %p121
    %p123 = scmp.ne.s32.totalorder %s111, %s112
    %p124 = scmp.eq.s32.totalorder %s18, 1
    %p125 = por %p123, %p124
    %p127 = scmp.ne.s32.totalorder %s112, %s126
    %p128 = scmp.eq.s32.totalorder %s18, 0
    %p129 = por %p127, %p128
    %s131 = sadd.s32 %s130, 1
    %p134 = scmp.eq.s32.totalorder %s12, 1
    %p135 = scmp.ne.s32.totalorder %s130, %s132
    %p136 = scmp.eq.s32.totalorder %s12, 0
    %p137 = por %p135, %p136
    %p138 = scmp.ne.s32.totalorder %s130, %s132
    %p139 = scmp.eq.s32.totalorder %s17, 1
    %p140 = por %p138, %p139
    %p141 = scmp.ne.s32.totalorder %s132, %s133
    %p142 = scmp.eq.s32.totalorder %s17, 0
    %p143 = por %p141, %p142
    %p144 = scmp.ne.s32.totalorder %s132, %s133
    %p145 = scmp.eq.s32.totalorder %s18, 1
    %p146 = por %p144, %p145
    %p148 = scmp.ne.s32.totalorder %s133, %s147
    %p149 = scmp.eq.s32.totalorder %s18, 0
    %p150 = por %p148, %p149
    %s151 = ssub.s32 %s12, %s19
    %p152 = scmp.eq.s32.totalorder %s151, 0
    %s154 = sadd.s32 %s153, 1
    %s155 = scalar_select %p152, %s153, %s154
    %p158 = pneg %p152
    %p159 = scmp.eq.s32.totalorder %s12, 1
    %p160 = por %p158, %p159
    %p161 = scmp.ne.s32.totalorder %s153, %s156
    %p162 = scmp.eq.s32.totalorder %s12, 0
    %p163 = por %p161, %p162
    %p164 = scmp.ne.s32.totalorder %s153, %s156
    %p165 = scmp.eq.s32.totalorder %s17, 1
    %p166 = por %p164, %p165
    %p167 = scmp.ne.s32.totalorder %s156, %s157
    %p168 = scmp.eq.s32.totalorder %s17, 0
    %p169 = por %p167, %p168
    %p170 = scmp.ne.s32.totalorder %s156, %s157
    %p171 = scmp.eq.s32.totalorder %s18, 1
    %p172 = por %p170, %p171
    %p174 = scmp.ne.s32.totalorder %s157, %s173
    %p175 = scmp.eq.s32.totalorder %s18, 0
    %p176 = por %p174, %p175
    %p177 = scmp.le.s32.totalorder 1, %s12
    %p178 = scmp.lt.s32.totalorder %s12, 3
    %p179 = pnand %p177, %p178
    %p180 = pneg %p179
    // Predicated region
    $region9: #{spatial_bias.1} parent=5 // pred_check
      _
    $region10: #{spatial_bias.1} parent=5 // pred_check_branch
      %182 = sbr.rel (%p179) target = $region12
    $region11: #{spatial_bias.1} parent=5 // pred_region
      %s183 = ssub.s32 %s12, 1
      // Predicated region
      $region13: #{spatial_bias.1} parent=11 // pred_check
        %p184 = pneg %p59
      $region14: #{spatial_bias.1} parent=11 // pred_check_branch
        %186 = sbr.rel (%p184) target = $region16
      $region15: #{spatial_bias.1} parent=11 // pred_region
        _
      $region16: #{spatial_bias.1} parent=11 // pred_fallthru
        _
      // Predicated region
      $region17: #{spatial_bias.1} parent=11 // pred_check
        %p187 = pneg %p80
      $region18: #{spatial_bias.1} parent=11 // pred_check_branch
        %189 = sbr.rel (%p187) target = $region20
      $region19: #{spatial_bias.1} parent=11 // pred_region
        _
      $region20: #{spatial_bias.1} parent=11 // pred_fallthru
        _
      // Predicated region
      $region21: #{spatial_bias.1} parent=11 // pred_check
        %p190 = pneg %p101
      $region22: #{spatial_bias.1} parent=11 // pred_check_branch
        %192 = sbr.rel (%p190) target = $region24
      $region23: #{spatial_bias.1} parent=11 // pred_region
        _
      $region24: #{spatial_bias.1} parent=11 // pred_fallthru
        _
      // Predicated region
      $region25: #{spatial_bias.1} parent=11 // pred_check
        %p193 = pneg %p122
      $region26: #{spatial_bias.1} parent=11 // pred_check_branch
        %195 = sbr.rel (%p193) target = $region28
      $region27: #{spatial_bias.1} parent=11 // pred_region
        _
      $region28: #{spatial_bias.1} parent=11 // pred_fallthru
        _
      // Predicated region
      $region29: #{spatial_bias.1} parent=11 // pred_check
        %p196 = pneg %p143
      $region30: #{spatial_bias.1} parent=11 // pred_check_branch
        %198 = sbr.rel (%p196) target = $region32
      $region31: #{spatial_bias.1} parent=11 // pred_region
        _
      $region32: #{spatial_bias.1} parent=11 // pred_fallthru
        _
    $region12: #{spatial_bias.1} parent=5 // pred_fallthru
      _
    %p199 = scmp.lt.s32.totalorder %s12, 2
    // Predicated region
    $region33: #{spatial_bias.1} parent=5 // pred_check
      %p200 = pneg %p199
    $region34: #{spatial_bias.1} parent=5 // pred_check_branch
      %202 = sbr.rel (%p200) target = $region36
    $region35: #{spatial_bias.1} parent=5 // pred_region
      // Predicated region
      $region37: #{spatial_bias.1} parent=35 // pred_check
        %p203 = pneg %p32
      $region38: #{spatial_bias.1} parent=35 // pred_check_branch
        %205 = sbr.rel (%p203) target = $region40
      $region39: #{spatial_bias.1} parent=35 // pred_region
        %p206 = scmp.lt.s32.totalorder %s12, 1
        %s207 = scalar_select %p206, %s12, 1
        %s208 = smul.addr %s207, 16
        %s209 = smul.addr %s208, 4
        %s210 = scalar_lea.vmem %s0, %s209
      $region40: #{spatial_bias.1} parent=35 // pred_fallthru
        _
    $region36: #{spatial_bias.1} parent=5 // pred_fallthru
      _
    %p211 = scmp.le.s32.totalorder 1, %s12
    %p212 = scmp.lt.s32.totalorder %s12, 3
    %p213 = pnand %p211, %p212
    %p214 = pneg %p213
    // Predicated region
    $region41: #{spatial_bias.1} parent=5 // pred_check
      _
    $region42: #{spatial_bias.1} parent=5 // pred_check_branch
      %216 = sbr.rel (%p213) target = $region44
    $region43: #{spatial_bias.1} parent=5 // pred_region
      %s217 = ssub.s32 %s12, 1
      %p218 = scmp.lt.s32.totalorder %s17, 1
      %s219 = scalar_select %p218, %s17, 1
      %s220 = smul.addr %s219, 16
      %s221 = smul.addr %s220, 4
      %s222 = scalar_lea.vmem %s0, %s221
      %p223 = pneg %p38
      %p224 = pneg %p35
      %p225 = pneg %p59
      %p226 = pneg %p56
      %p227 = pneg %p80
      %p228 = pneg %p77
      %p229 = pneg %p101
      %p230 = pneg %p98
      %p231 = pneg %p122
      %p232 = pneg %p119
      %p233 = pneg %p143
      %p234 = pneg %p140
      %p235 = pneg %p169
      %p236 = pneg %p166
      %p237 = scmp.lt.s32.totalorder %s17, 1
      %s238 = scalar_select %p237, %s17, 1
      %s239 = smul.addr %s238, 8
      %s240 = smul.addr %s239, 8
      %s241 = scalar_lea.vmem %s6, %s240
      %p242 = scmp.lt.s32.totalorder %s17, 1
      %s243 = scalar_select %p242, %s17, 1
      %s244 = smul.addr %s243, 16
      %s245 = smul.addr %s244, 4
      %s246 = scalar_lea.vmem %s0, %s245
      %p247 = scmp.lt.s32.totalorder %s17, 1
      %s248 = scalar_select %p247, %s17, 1
      %s249 = smul.addr %s248, 8
      %s250 = smul.addr %s249, 8
      %s251 = scalar_lea.vmem %s6, %s250
      %v253 = vld [vmem:[%s1] sm:$0xf]
      %v254 = vld [vmem:[%s1 + $0x4] sm:$0xf]
      %v255 = vld [vmem:[%s1 + $0x8] sm:$0xf]
      %v256 = vld [vmem:[%s1 + $0xc] sm:$0xf]
      %v257 = vld [vmem:[%s1 + $0x10] sm:$0xf]
      %v258 = vld [vmem:[%s1 + $0x14] sm:$0xf]
      %v259 = vld [vmem:[%s1 + $0x18] sm:$0xf]
      %v260 = vld [vmem:[%s1 + $0x1c] sm:$0xf]
      %v261 = vld [vmem:[%s1 + $0x20] sm:$0x1]
      %v262 = vld [vmem:[%s246] sm:$0xff]
      %v263 = vld [vmem:[%s246 + $0x8] sm:$0xff]
      %v264 = vld [vmem:[%s246 + $0x10] sm:$0xff]
      %v265 = vld [vmem:[%s246 + $0x18] sm:$0xff]
      %v266 = vld [vmem:[%s246 + $0x20] sm:$0xff]
      %v267 = vld [vmem:[%s246 + $0x28] sm:$0xff]
      %v268 = vld [vmem:[%s246 + $0x30] sm:$0xff]
      %v269 = vld [vmem:[%s246 + $0x38] sm:$0xff]
      %v270 = vld [vmem:[%s2] sm:$0xff]
      %v271 = vld [vmem:[%s2 + $0x8] sm:$0xff]
      %v272 = vld [vmem:[%s2 + $0x10] sm:$0xff]
      %v273 = vld [vmem:[%s2 + $0x18] sm:$0xff]
      %v274 = vld [vmem:[%s2 + $0x20] sm:$0xff]
      %v275 = vld [vmem:[%s2 + $0x28] sm:$0xff]
      %v276 = vld [vmem:[%s2 + $0x30] sm:$0xff]
      %v277 = vld [vmem:[%s2 + $0x38] sm:$0xff]
      %v278 = vld [vmem:[%s2 + $0x40] sm:$0x3]
      %280 = vset.pattern.permute.xlu0 0
      %281 = vperm.xlu0 %280, %v270
      %v282 = vpop.permute.xlu0 %281
      %285 = vset.pattern.permute.xlu0 0
      %286 = vperm.xlu0 %285, %v271
      %v287 = vpop.permute.xlu0 %286
      %290 = vset.pattern.permute.xlu0 0
      %291 = vperm.xlu0 %290, %v272
      %v292 = vpop.permute.xlu0 %291
      %295 = vset.pattern.permute.xlu0 0
      %296 = vperm.xlu0 %295, %v273
      %v297 = vpop.permute.xlu0 %296
      %300 = vset.pattern.permute.xlu0 0
      %301 = vperm.xlu0 %300, %v274
      %v302 = vpop.permute.xlu0 %301
      %305 = vset.pattern.permute.xlu0 0
      %306 = vperm.xlu0 %305, %v275
      %v307 = vpop.permute.xlu0 %306
      %310 = vset.pattern.permute.xlu0 0
      %311 = vperm.xlu0 %310, %v276
      %v312 = vpop.permute.xlu0 %311
      %315 = vset.pattern.permute.xlu0 0
      %316 = vperm.xlu0 %315, %v277
      %v317 = vpop.permute.xlu0 %316
      %320 = vset.pattern.permute.xlu0 0
      %321 = vperm.xlu0 %320, %v278
      %v322 = vpop.permute.xlu0 %321
      %v333 = vunpack.c.l.b16 %v253
      %v334 = vunpack.c.l.b16 %v254
      %v335 = vunpack.c.l.b16 %v255
      %v336 = vunpack.c.l.b16 %v256
      %v337 = vunpack.c.l.b16 %v257
      %v338 = vunpack.c.l.b16 %v258
      %v339 = vunpack.c.l.b16 %v259
      %v340 = vunpack.c.l.b16 %v260
      %v341 = vunpack.c.l.b16 %v261
      %v342 = vpack.c.b16 %v334, %v333
      %v343 = vpack.c.b16 %v336, %v335
      %v344 = vpack.c.b16 %v338, %v337
      %v345 = vpack.c.b16 %v340, %v339
      %v346 = vpack.c.b16 %v341, %v341
      %v355 = vunpack.c.l.b16 %v262
      %v356 = vunpack.c.h.b16 %v262
      %v357 = vunpack.c.l.b16 %v263
      %v358 = vunpack.c.h.b16 %v263
      %v359 = vunpack.c.l.b16 %v264
      %v360 = vunpack.c.h.b16 %v264
      %v361 = vunpack.c.l.b16 %v265
      %v362 = vunpack.c.h.b16 %v265
      %v363 = vunpack.c.l.b16 %v266
      %v364 = vunpack.c.h.b16 %v266
      %v365 = vunpack.c.l.b16 %v267
      %v366 = vunpack.c.h.b16 %v267
      %v367 = vunpack.c.l.b16 %v268
      %v368 = vunpack.c.h.b16 %v268
      %v369 = vunpack.c.l.b16 %v269
      %v370 = vunpack.c.h.b16 %v269
      %v371 = vpack.c.b16 %v357, %v355
      %v372 = vpack.c.b16 %v358, %v356
      %v373 = vpack.c.b16 %v361, %v359
      %v374 = vpack.c.b16 %v362, %v360
      %v375 = vpack.c.b16 %v365, %v363
      %v376 = vpack.c.b16 %v366, %v364
      %v377 = vpack.c.b16 %v369, %v367
      %v378 = vpack.c.b16 %v370, %v368
      %vm387 = vcmask 523264
      %v389 = vsel %vm387, %v342, 0
      %v392 = vsel %vm387, %v343, 0
      %v395 = vsel %vm387, %v344, 0
      %v398 = vsel %vm387, %v345, 0
      %v401 = vsel %vm387, %v346, 0
      %403 = vmatprep.subr.bf16.mxu0 %v372
      %404 = vmatpush1.bf16.msra.mxu0 %v371
      %405 = vmatprep.subr.bf16.mxu0 %v374
      %406 = vmatpush1.bf16.msra.mxu0 %v373
      %407 = vmatprep.subr.bf16.mxu0 %v376
      %408 = vmatpush1.bf16.msra.mxu0 %v375
      %409 = vmatprep.subr.bf16.mxu0 %v378
      %410 = vmatpush1.bf16.msra.mxu0 %v377
      %411 = vmatprep.subr.bf16.mxu0 0
      %412 = vmatpush1.bf16.msra.mxu0 0
      %413 = vmatprep.subr.bf16.mxu0 0
      %414 = vmatpush1.bf16.msra.mxu0 0
      %415 = vmatprep.subr.bf16.mxu0 0
      %416 = vmatpush1.bf16.msra.mxu0 0
      %417 = vmatprep.subr.bf16.mxu0 0
      %418 = vmatpush1.bf16.msra.mxu0 0
      %419 = vmatprep.subr.bf16.mxu0 0
      %420 = vmatpush1.bf16.msra.mxu0 0
      %421 = vmatprep.subr.bf16.mxu0 0
      %422 = vmatpush1.bf16.msra.mxu0 0
      %423 = vmatprep.subr.bf16.mxu0 0
      %424 = vmatpush1.bf16.msra.mxu0 0
      %425 = vmatprep.subr.bf16.mxu0 0
      %426 = vmatpush1.bf16.msra.mxu0 0
      %427 = vmatprep.subr.bf16.mxu0 0
      %428 = vmatpush1.bf16.msra.mxu0 0
      %429 = vmatprep.subr.bf16.mxu0 0
      %430 = vmatpush1.bf16.msra.mxu0 0
      %431 = vmatprep.subr.bf16.mxu0 0
      %432 = vmatpush1.bf16.msra.mxu0 0
      %433 = vmatprep.subr.bf16.mxu0 0
      %434 = vmatpush1.bf16.msra.mxu0 0
      %435 = vmatprep.mubr.bf16.mxu0 0
      %436 = vmatmul.mubr.bf16.gmra.mrb[0].mxu0 %v389
      %v437 = vpop.f32.mrb[0].mxu0
      %v438 = vadd.f32 %v282, %v437
      %v439 = vpop.f32.mrb[0].mxu0
      %v440 = vadd.f32 %v282, %v439
      %v441 = vpop.f32.mrb[0].mxu0
      %v442 = vadd.f32 %v287, %v441
      %v443 = vpop.f32.mrb[0].mxu0
      %v444 = vadd.f32 %v287, %v443
      %445 = vmatprep.mubr.bf16.mxu0 0
      %446 = vmatmul.mubr.bf16.gmra.mrb[0].mxu0 %v392
      %v447 = vpop.f32.mrb[0].mxu0
      %v448 = vadd.f32 %v292, %v447
      %v449 = vpop.f32.mrb[0].mxu0
      %v450 = vadd.f32 %v292, %v449
      %v451 = vpop.f32.mrb[0].mxu0
      %v452 = vadd.f32 %v297, %v451
      %v453 = vpop.f32.mrb[0].mxu0
      %v454 = vadd.f32 %v297, %v453
      %455 = vmatprep.mubr.bf16.mxu0 0
      %456 = vmatmul.mubr.bf16.gmra.mrb[0].mxu0 %v395
      %v457 = vpop.f32.mrb[0].mxu0
      %v458 = vadd.f32 %v302, %v457
      %v459 = vpop.f32.mrb[0].mxu0
      %v460 = vadd.f32 %v302, %v459
      %v461 = vpop.f32.mrb[0].mxu0
      %v462 = vadd.f32 %v307, %v461
      %v463 = vpop.f32.mrb[0].mxu0
      %v464 = vadd.f32 %v307, %v463
      %465 = vmatprep.mubr.bf16.mxu0 0
      %466 = vmatmul.mubr.bf16.gmra.mrb[0].mxu0 %v398
      %v467 = vpop.f32.mrb[0].mxu0
      %v468 = vadd.f32 %v312, %v467
      %v469 = vpop.f32.mrb[0].mxu0
      %v470 = vadd.f32 %v312, %v469
      %v471 = vpop.f32.mrb[0].mxu0
      %v472 = vadd.f32 %v317, %v471
      %v473 = vpop.f32.mrb[0].mxu0
      %v474 = vadd.f32 %v317, %v473
      %475 = vmatprep.mubr.bf16.mxu0 0
      %476 = vmatmul.mubr.bf16.gmra.mrb[0].mxu0 %v401
      %v477 = vpop.f32.mrb[0].mxu0
      %v478 = vadd.f32 %v322, %v477
      %v479 = vpop.f32.mrb[0].mxu0
      %v480 = vadd.f32 %v322, %v479
      %v481 = vpop.f32.mrb[0].mxu0
      %v482 = vpop.f32.mrb[0].mxu0
      %483 = vdwg.mxu0
      %v484 = vmax.f32 %v438, 0.0
      %v485 = vmax.f32 %v440, 0.0
      %v486 = vmax.f32 %v442, 0.0
      %v487 = vmax.f32 %v444, 0.0
      %v488 = vmax.f32 %v448, 0.0
      %v489 = vmax.f32 %v450, 0.0
      %v490 = vmax.f32 %v452, 0.0
      %v491 = vmax.f32 %v454, 0.0
      %v492 = vmax.f32 %v458, 0.0
      %v493 = vmax.f32 %v460, 0.0
      %v494 = vmax.f32 %v462, 0.0
      %v495 = vmax.f32 %v464, 0.0
      %v496 = vmax.f32 %v468, 0.0
      %v497 = vmax.f32 %v470, 0.0
      %v498 = vmax.f32 %v472, 0.0
      %v499 = vmax.f32 %v474, 0.0
      %v500 = vmax.f32 %v478, 0.0
      %v501 = vmax.f32 %v480, 0.0
      %v502 = vld [vmem:[%s3] sm:$0xff]
      %v503 = vld [vmem:[%s3 + $0x8] sm:$0xff]
      %v504 = vld [vmem:[%s3 + $0x10] sm:$0xff]
      %v505 = vld [vmem:[%s3 + $0x18] sm:$0xff]
      %v506 = vld [vmem:[%s3 + $0x20] sm:$0xff]
      %v507 = vld [vmem:[%s3 + $0x28] sm:$0xff]
      %v508 = vld [vmem:[%s3 + $0x30] sm:$0xff]
      %v509 = vld [vmem:[%s3 + $0x38] sm:$0xff]
      %v510 = vld [vmem:[%s3 + $0x40] sm:$0xff]
      %v511 = vld [vmem:[%s3 + $0x48] sm:$0xff]
      %v512 = vld [vmem:[%s3 + $0x50] sm:$0xff]
      %v513 = vld [vmem:[%s3 + $0x58] sm:$0xff]
      %v514 = vld [vmem:[%s3 + $0x60] sm:$0xff]
      %v515 = vld [vmem:[%s3 + $0x68] sm:$0xff]
      %v516 = vld [vmem:[%s3 + $0x70] sm:$0xff]
      %v517 = vld [vmem:[%s3 + $0x78] sm:$0xff]
      %v518 = vld [vmem:[%s3 + $0x80] sm:$0xff]
      %v519 = vld [vmem:[%s3 + $0x88] sm:$0xff]
      %v520 = vld [vmem:[%s3 + $0x90] sm:$0xff]
      %v521 = vld [vmem:[%s3 + $0x98] sm:$0xff]
      %v522 = vld [vmem:[%s3 + $0xa0] sm:$0xff]
      %v523 = vld [vmem:[%s3 + $0xa8] sm:$0xff]
      %v524 = vld [vmem:[%s3 + $0xb0] sm:$0xff]
      %v525 = vld [vmem:[%s3 + $0xb8] sm:$0xff]
      %v526 = vld [vmem:[%s3 + $0xc0] sm:$0xff]
      %v527 = vld [vmem:[%s3 + $0xc8] sm:$0xff]
      %v528 = vld [vmem:[%s3 + $0xd0] sm:$0xff]
      %v529 = vld [vmem:[%s3 + $0xd8] sm:$0xff]
      %v530 = vld [vmem:[%s3 + $0xe0] sm:$0xff]
      %v531 = vld [vmem:[%s3 + $0xe8] sm:$0xff]
      %v532 = vld [vmem:[%s3 + $0xf0] sm:$0xff]
      %v533 = vld [vmem:[%s3 + $0xf8] sm:$0xff]
      %534 = vmatprep.subr.mxu0 0.0
      %535 = vmatpush1.msra.mxu0 %v502
      %536 = vmatprep.subr.mxu0 0.0
      %537 = vmatpush1.msra.mxu0 %v503
      %538 = vmatprep.subr.mxu0 0.0
      %539 = vmatpush1.msra.mxu0 %v504
      %540 = vmatprep.subr.mxu0 0.0
      %541 = vmatpush1.msra.mxu0 %v505
      %542 = vmatprep.subr.mxu0 0.0
      %543 = vmatpush1.msra.mxu0 %v506
      %544 = vmatprep.subr.mxu0 0.0
      %545 = vmatpush1.msra.mxu0 %v507
      %546 = vmatprep.subr.mxu0 0.0
      %547 = vmatpush1.msra.mxu0 %v508
      %548 = vmatprep.subr.mxu0 0.0
      %549 = vmatpush1.msra.mxu0 %v509
      %550 = vmatprep.subr.mxu0 0.0
      %551 = vmatpush1.msra.mxu0 %v510
      %552 = vmatprep.subr.mxu0 0.0
      %553 = vmatpush1.msra.mxu0 %v511
      %554 = vmatprep.subr.mxu0 0.0
      %555 = vmatpush1.msra.mxu0 %v512
      %556 = vmatprep.subr.mxu0 0.0
      %557 = vmatpush1.msra.mxu0 %v513
      %558 = vmatprep.subr.mxu0 0.0
      %559 = vmatpush1.msra.mxu0 %v514
      %560 = vmatprep.subr.mxu0 0.0
      %561 = vmatpush1.msra.mxu0 %v515
      %562 = vmatprep.subr.mxu0 0.0
      %563 = vmatpush1.msra.mxu0 %v516
      %564 = vmatprep.subr.mxu0 0.0
      %565 = vmatpush1.msra.mxu0 %v517
      %566 = vmatprep.subr.mxu0 0.0
      %567 = vmatpush1.msra.mxu0 %v518
      %568 = vmatprep.subr.mxu0 0.0
      %569 = vmatpush1.msra.mxu0 %v519
      %570 = vmatprep.subr.mxu0 0.0
      %571 = vmatpush1.msra.mxu0 %v520
      %572 = vmatprep.subr.mxu0 0.0
      %573 = vmatpush1.msra.mxu0 %v521
      %574 = vmatprep.subr.mxu0 0.0
      %575 = vmatpush1.msra.mxu0 %v522
      %576 = vmatprep.subr.mxu0 0.0
      %577 = vmatpush1.msra.mxu0 %v523
      %578 = vmatprep.subr.mxu0 0.0
      %579 = vmatpush1.msra.mxu0 %v524
      %580 = vmatprep.subr.mxu0 0.0
      %581 = vmatpush1.msra.mxu0 %v525
      %582 = vmatprep.subr.mxu0 0.0
      %583 = vmatpush1.msra.mxu0 %v526
      %584 = vmatprep.subr.mxu0 0.0
      %585 = vmatpush1.msra.mxu0 %v527
      %586 = vmatprep.subr.mxu0 0.0
      %587 = vmatpush1.msra.mxu0 %v528
      %588 = vmatprep.subr.mxu0 0.0
      %589 = vmatpush1.msra.mxu0 %v529
      %590 = vmatprep.subr.mxu0 0.0
      %591 = vmatpush1.msra.mxu0 %v530
      %592 = vmatprep.subr.mxu0 0.0
      %593 = vmatpush1.msra.mxu0 %v531
      %594 = vmatprep.subr.mxu0 0.0
      %595 = vmatpush1.msra.mxu0 %v532
      %596 = vmatprep.subr.mxu0 0.0
      %597 = vmatpush1.msra.mxu0 %v533
      %598 = vmatprep.mubr.f32.mxu0 %v485
      %599 = vmatmul.mubr.f32.gmra.mrb[0].mxu0 %v484
      %v600 = vpop.f32.mrb[0].mxu0
      %v601 = vadd.f32 0.0, %v600
      %v602 = vpop.f32.mrb[0].mxu0
      %603 = vmatprep.mubr.f32.mxu0 %v487
      %604 = vmatmul.mubr.f32.gmra.mrb[0].mxu0 %v486
      %v605 = vpop.f32.mrb[0].mxu0
      %v606 = vadd.f32 0.0, %v605
      %v607 = vpop.f32.mrb[0].mxu0
      %608 = vmatprep.mubr.f32.mxu0 %v489
      %609 = vmatmul.mubr.f32.gmra.mrb[0].mxu0 %v488
      %v610 = vpop.f32.mrb[0].mxu0
      %v611 = vadd.f32 0.0, %v610
      %v612 = vpop.f32.mrb[0].mxu0
      %613 = vmatprep.mubr.f32.mxu0 %v491
      %614 = vmatmul.mubr.f32.gmra.mrb[0].mxu0 %v490
      %v615 = vpop.f32.mrb[0].mxu0
      %v616 = vadd.f32 0.0, %v615
      %v617 = vpop.f32.mrb[0].mxu0
      %618 = vmatprep.mubr.f32.mxu0 %v493
      %619 = vmatmul.mubr.f32.gmra.mrb[0].mxu0 %v492
      %v620 = vpop.f32.mrb[0].mxu0
      %v621 = vadd.f32 0.0, %v620
      %v622 = vpop.f32.mrb[0].mxu0
      %623 = vmatprep.mubr.f32.mxu0 %v495
      %624 = vmatmul.mubr.f32.gmra.mrb[0].mxu0 %v494
      %v625 = vpop.f32.mrb[0].mxu0
      %v626 = vadd.f32 0.0, %v625
      %v627 = vpop.f32.mrb[0].mxu0
      %628 = vmatprep.mubr.f32.mxu0 %v497
      %629 = vmatmul.mubr.f32.gmra.mrb[0].mxu0 %v496
      %v630 = vpop.f32.mrb[0].mxu0
      %v631 = vadd.f32 0.0, %v630
      %v632 = vpop.f32.mrb[0].mxu0
      %633 = vmatprep.mubr.f32.mxu0 %v499
      %634 = vmatmul.mubr.f32.gmra.mrb[0].mxu0 %v498
      %v635 = vpop.f32.mrb[0].mxu0
      %v636 = vadd.f32 0.0, %v635
      %v637 = vpop.f32.mrb[0].mxu0
      %638 = vmatprep.mubr.f32.mxu0 %v501
      %639 = vmatmul.mubr.f32.gmra.mrb[0].mxu0 %v500
      %v640 = vpop.f32.mrb[0].mxu0
      %v641 = vadd.f32 0.0, %v640
      %v642 = vpop.f32.mrb[0].mxu0
      %643 = vdwg.mxu0
      %v644 = vld [vmem:[%s5] sm:$0x1]
      %v645 = vld [vmem:[%s4] sm:$0xf]
      %vm646 = vcmask 31744
      %v648 = vsel %vm646, %v601, 0
      %v651 = vsel %vm646, %v606, 0
      %v654 = vsel %vm646, %v611, 0
      %v657 = vsel %vm646, %v616, 0
      %v660 = vsel %vm646, %v621, 0
      %v663 = vsel %vm646, %v626, 0
      %v666 = vsel %vm646, %v631, 0
      %v669 = vsel %vm646, %v636, 0
      %vm671 = vcmask 1043456
      %v673 = vsel %vm671, %v645, 0
      %675 = vmatprep.subr.mxu0 0.0
      %676 = vmatpush1.msra.mxu0 %v673
      %677 = vmatprep.subr.mxu0 0.0
      %678 = vmatpush1.msra.mxu0 0.0
      %679 = vmatprep.subr.mxu0 0.0
      %680 = vmatpush1.msra.mxu0 0.0
      %681 = vmatprep.subr.mxu0 0.0
      %682 = vmatpush1.msra.mxu0 0.0
      %683 = vmatprep.subr.mxu0 0.0
      %684 = vmatpush1.msra.mxu0 0.0
      %685 = vmatprep.subr.mxu0 0.0
      %686 = vmatpush1.msra.mxu0 0.0
      %687 = vmatprep.subr.mxu0 0.0
      %688 = vmatpush1.msra.mxu0 0.0
      %689 = vmatprep.subr.mxu0 0.0
      %690 = vmatpush1.msra.mxu0 0.0
      %691 = vmatprep.subr.mxu0 0.0
      %692 = vmatpush1.msra.mxu0 0.0
      %693 = vmatprep.subr.mxu0 0.0
      %694 = vmatpush1.msra.mxu0 0.0
      %695 = vmatprep.subr.mxu0 0.0
      %696 = vmatpush1.msra.mxu0 0.0
      %697 = vmatprep.subr.mxu0 0.0
      %698 = vmatpush1.msra.mxu0 0.0
      %699 = vmatprep.subr.mxu0 0.0
      %700 = vmatpush1.msra.mxu0 0.0
      %701 = vmatprep.subr.mxu0 0.0
      %702 = vmatpush1.msra.mxu0 0.0
      %703 = vmatprep.subr.mxu0 0.0
      %704 = vmatpush1.msra.mxu0 0.0
      %705 = vmatprep.subr.mxu0 0.0
      %706 = vmatpush1.msra.mxu0 0.0
      %707 = vmatprep.subr.mxu0 0.0
      %708 = vmatpush1.msra.mxu0 0.0
      %709 = vmatprep.subr.mxu0 0.0
      %710 = vmatpush1.msra.mxu0 0.0
      %711 = vmatprep.subr.mxu0 0.0
      %712 = vmatpush1.msra.mxu0 0.0
      %713 = vmatprep.subr.mxu0 0.0
      %714 = vmatpush1.msra.mxu0 0.0
      %715 = vmatprep.subr.mxu0 0.0
      %716 = vmatpush1.msra.mxu0 0.0
      %717 = vmatprep.subr.mxu0 0.0
      %718 = vmatpush1.msra.mxu0 0.0
      %719 = vmatprep.subr.mxu0 0.0
      %720 = vmatpush1.msra.mxu0 0.0
      %721 = vmatprep.subr.mxu0 0.0
      %722 = vmatpush1.msra.mxu0 0.0
      %723 = vmatprep.subr.mxu0 0.0
      %724 = vmatpush1.msra.mxu0 0.0
      %725 = vmatprep.subr.mxu0 0.0
      %726 = vmatpush1.msra.mxu0 0.0
      %727 = vmatprep.subr.mxu0 0.0
      %728 = vmatpush1.msra.mxu0 0.0
      %729 = vmatprep.subr.mxu0 0.0
      %730 = vmatpush1.msra.mxu0 0.0
      %731 = vmatprep.subr.mxu0 0.0
      %732 = vmatpush1.msra.mxu0 0.0
      %733 = vmatprep.subr.mxu0 0.0
      %734 = vmatpush1.msra.mxu0 0.0
      %735 = vmatprep.subr.mxu0 0.0
      %736 = vmatpush1.msra.mxu0 0.0
      %737 = vmatprep.subr.mxu0 0.0
      %738 = vmatpush1.msra.mxu0 0.0
      %739 = vmatprep.mubr.f32.mxu0 0.0
      %740 = vmatmul.mubr.f32.gmra.mrb[0].mxu0 %v648
      %v741 = vpop.f32.mrb[0].mxu0
      %v742 = vadd.f32 0.0, %v741
      %v743 = vpop.f32.mrb[0].mxu0
      %744 = vmatprep.mubr.f32.mxu0 0.0
      %745 = vmatmul.mubr.f32.gmra.mrb[0].mxu0 %v651
      %v746 = vpop.f32.mrb[0].mxu0
      %v747 = vadd.f32 0.0, %v746
      %v748 = vpop.f32.mrb[0].mxu0
      %749 = vmatprep.mubr.f32.mxu0 0.0
      %750 = vmatmul.mubr.f32.gmra.mrb[0].mxu0 %v654
      %v751 = vpop.f32.mrb[0].mxu0
      %v752 = vadd.f32 0.0, %v751
      %v753 = vpop.f32.mrb[0].mxu0
      %754 = vmatprep.mubr.f32.mxu0 0.0
      %755 = vmatmul.mubr.f32.gmra.mrb[0].mxu0 %v657
      %v756 = vpop.f32.mrb[0].mxu0
      %v757 = vadd.f32 0.0, %v756
      %v758 = vpop.f32.mrb[0].mxu0
      %759 = vmatprep.mubr.f32.mxu0 0.0
      %760 = vmatmul.mubr.f32.gmra.mrb[0].mxu0 %v660
      %v761 = vpop.f32.mrb[0].mxu0
      %v762 = vadd.f32 0.0, %v761
      %v763 = vpop.f32.mrb[0].mxu0
      %764 = vmatprep.mubr.f32.mxu0 0.0
      %765 = vmatmul.mubr.f32.gmra.mrb[0].mxu0 %v663
      %v766 = vpop.f32.mrb[0].mxu0
      %v767 = vadd.f32 0.0, %v766
      %v768 = vpop.f32.mrb[0].mxu0
      %769 = vmatprep.mubr.f32.mxu0 0.0
      %770 = vmatmul.mubr.f32.gmra.mrb[0].mxu0 %v666
      %v771 = vpop.f32.mrb[0].mxu0
      %v772 = vadd.f32 0.0, %v771
      %v773 = vpop.f32.mrb[0].mxu0
      %774 = vmatprep.mubr.f32.mxu0 0.0
      %775 = vmatmul.mubr.f32.gmra.mrb[0].mxu0 %v669
      %v776 = vpop.f32.mrb[0].mxu0
      %v777 = vadd.f32 0.0, %v776
      %v778 = vpop.f32.mrb[0].mxu0
      %779 = vdwg.mxu0
      %v781 = vlaneseq
      %v782 = vshrl.u32 %v781, 7
      %v783 = vsub.s32 0, %v782
      %v784 = vrot.slane %v644, %v783
      %v786 = vadd.f32 %v784, %v742
      %v787 = vadd.f32 %v784, %v747
      %v788 = vadd.f32 %v784, %v752
      %v789 = vadd.f32 %v784, %v757
      %v790 = vadd.f32 %v784, %v762
      %v791 = vadd.f32 %v784, %v767
      %v792 = vadd.f32 %v784, %v772
      %v793 = vadd.f32 %v784, %v777
      %s794 = scalar_lea.vmem %s4, 4
      %v795 = vld [vmem:[%s794] sm:$0xf]
      %vm797 = vcmask 1046528
      %v798 = vrot.slane %v601, 1
      %v799 = vrot.slane %v606, 1
      %v800 = vsel %vm797, %v798, %v799
      %v801 = vrot.slane %v611, 1
      %v802 = vsel %vm797, %v799, %v801
      %v803 = vrot.slane %v616, 1
      %v804 = vsel %vm797, %v801, %v803
      %v805 = vrot.slane %v621, 1
      %v806 = vsel %vm797, %v803, %v805
      %v807 = vrot.slane %v626, 1
      %v808 = vsel %vm797, %v805, %v807
      %v809 = vrot.slane %v631, 1
      %v810 = vsel %vm797, %v807, %v809
      %v811 = vrot.slane %v636, 1
      %v812 = vsel %vm797, %v809, %v811
      %v813 = vrot.slane %v641, 1
      %v814 = vsel %vm797, %v811, %v813
      %v815 = vsel %vm646, %v800, 0
      %v817 = vsel %vm646, %v802, 0
      %v819 = vsel %vm646, %v804, 0
      %v821 = vsel %vm646, %v806, 0
      %v823 = vsel %vm646, %v808, 0
      %v825 = vsel %vm646, %v810, 0
      %v827 = vsel %vm646, %v812, 0
      %v829 = vsel %vm646, %v814, 0
      %v832 = vsel %vm671, %v795, 0
      %834 = vmatprep.subr.mxu0 0.0
      %835 = vmatpush1.msra.mxu0 %v832
      %836 = vmatprep.subr.mxu0 0.0
      %837 = vmatpush1.msra.mxu0 0.0
      %838 = vmatprep.subr.mxu0 0.0
      %839 = vmatpush1.msra.mxu0 0.0
      %840 = vmatprep.subr.mxu0 0.0
      %841 = vmatpush1.msra.mxu0 0.0
      %842 = vmatprep.subr.mxu0 0.0
      %843 = vmatpush1.msra.mxu0 0.0
      %844 = vmatprep.subr.mxu0 0.0
      %845 = vmatpush1.msra.mxu0 0.0
      %846 = vmatprep.subr.mxu0 0.0
      %847 = vmatpush1.msra.mxu0 0.0
      %848 = vmatprep.subr.mxu0 0.0
      %849 = vmatpush1.msra.mxu0 0.0
      %850 = vmatprep.subr.mxu0 0.0
      %851 = vmatpush1.msra.mxu0 0.0
      %852 = vmatprep.subr.mxu0 0.0
      %853 = vmatpush1.msra.mxu0 0.0
      %854 = vmatprep.subr.mxu0 0.0
      %855 = vmatpush1.msra.mxu0 0.0
      %856 = vmatprep.subr.mxu0 0.0
      %857 = vmatpush1.msra.mxu0 0.0
      %858 = vmatprep.subr.mxu0 0.0
      %859 = vmatpush1.msra.mxu0 0.0
      %860 = vmatprep.subr.mxu0 0.0
      %861 = vmatpush1.msra.mxu0 0.0
      %862 = vmatprep.subr.mxu0 0.0
      %863 = vmatpush1.msra.mxu0 0.0
      %864 = vmatprep.subr.mxu0 0.0
      %865 = vmatpush1.msra.mxu0 0.0
      %866 = vmatprep.subr.mxu0 0.0
      %867 = vmatpush1.msra.mxu0 0.0
      %868 = vmatprep.subr.mxu0 0.0
      %869 = vmatpush1.msra.mxu0 0.0
      %870 = vmatprep.subr.mxu0 0.0
      %871 = vmatpush1.msra.mxu0 0.0
      %872 = vmatprep.subr.mxu0 0.0
      %873 = vmatpush1.msra.mxu0 0.0
      %874 = vmatprep.subr.mxu0 0.0
      %875 = vmatpush1.msra.mxu0 0.0
      %876 = vmatprep.subr.mxu0 0.0
      %877 = vmatpush1.msra.mxu0 0.0
      %878 = vmatprep.subr.mxu0 0.0
      %879 = vmatpush1.msra.mxu0 0.0
      %880 = vmatprep.subr.mxu0 0.0
      %881 = vmatpush1.msra.mxu0 0.0
      %882 = vmatprep.subr.mxu0 0.0
      %883 = vmatpush1.msra.mxu0 0.0
      %884 = vmatprep.subr.mxu0 0.0
      %885 = vmatpush1.msra.mxu0 0.0
      %886 = vmatprep.subr.mxu0 0.0
      %887 = vmatpush1.msra.mxu0 0.0
      %888 = vmatprep.subr.mxu0 0.0
      %889 = vmatpush1.msra.mxu0 0.0
      %890 = vmatprep.subr.mxu0 0.0
      %891 = vmatpush1.msra.mxu0 0.0
      %892 = vmatprep.subr.mxu0 0.0
      %893 = vmatpush1.msra.mxu0 0.0
      %894 = vmatprep.subr.mxu0 0.0
      %895 = vmatpush1.msra.mxu0 0.0
      %896 = vmatprep.subr.mxu0 0.0
      %897 = vmatpush1.msra.mxu0 0.0
      %898 = vmatprep.mubr.f32.mxu0 0.0
      %899 = vmatmul.mubr.f32.gmra.mrb[0].mxu0 %v815
      %v900 = vpop.f32.mrb[0].mxu0
      %v901 = vadd.f32 0.0, %v900
      %v902 = vpop.f32.mrb[0].mxu0
      %903 = vmatprep.mubr.f32.mxu0 0.0
      %904 = vmatmul.mubr.f32.gmra.mrb[0].mxu0 %v817
      %v905 = vpop.f32.mrb[0].mxu0
      %v906 = vadd.f32 0.0, %v905
      %v907 = vpop.f32.mrb[0].mxu0
      %908 = vmatprep.mubr.f32.mxu0 0.0
      %909 = vmatmul.mubr.f32.gmra.mrb[0].mxu0 %v819
      %v910 = vpop.f32.mrb[0].mxu0
      %v911 = vadd.f32 0.0, %v910
      %v912 = vpop.f32.mrb[0].mxu0
      %913 = vmatprep.mubr.f32.mxu0 0.0
      %914 = vmatmul.mubr.f32.gmra.mrb[0].mxu0 %v821
      %v915 = vpop.f32.mrb[0].mxu0
      %v916 = vadd.f32 0.0, %v915
      %v917 = vpop.f32.mrb[0].mxu0
      %918 = vmatprep.mubr.f32.mxu0 0.0
      %919 = vmatmul.mubr.f32.gmra.mrb[0].mxu0 %v823
      %v920 = vpop.f32.mrb[0].mxu0
      %v921 = vadd.f32 0.0, %v920
      %v922 = vpop.f32.mrb[0].mxu0
      %923 = vmatprep.mubr.f32.mxu0 0.0
      %924 = vmatmul.mubr.f32.gmra.mrb[0].mxu0 %v825
      %v925 = vpop.f32.mrb[0].mxu0
      %v926 = vadd.f32 0.0, %v925
      %v927 = vpop.f32.mrb[0].mxu0
      %928 = vmatprep.mubr.f32.mxu0 0.0
      %929 = vmatmul.mubr.f32.gmra.mrb[0].mxu0 %v827
      %v930 = vpop.f32.mrb[0].mxu0
      %v931 = vadd.f32 0.0, %v930
      %v932 = vpop.f32.mrb[0].mxu0
      %933 = vmatprep.mubr.f32.mxu0 0.0
      %934 = vmatmul.mubr.f32.gmra.mrb[0].mxu0 %v829
      %v935 = vpop.f32.mrb[0].mxu0
      %v936 = vadd.f32 0.0, %v935
      %v937 = vpop.f32.mrb[0].mxu0
      %938 = vdwg.mxu0
      %v939 = vadd.f32 %v786, %v901
      %v940 = vadd.f32 %v787, %v906
      %v941 = vadd.f32 %v788, %v911
      %v942 = vadd.f32 %v789, %v916
      %v943 = vadd.f32 %v790, %v921
      %v944 = vadd.f32 %v791, %v926
      %v945 = vadd.f32 %v792, %v931
      %v946 = vadd.f32 %v793, %v936
      %s947 = scalar_lea.vmem %s4, 8
      %v948 = vld [vmem:[%s947] sm:$0xf]
      %vm949 = vcmask 1045504
      %v950 = vrot.slane %v601, 2
      %v951 = vrot.slane %v606, 2
      %v952 = vsel %vm949, %v950, %v951
      %v953 = vrot.slane %v611, 2
      %v954 = vsel %vm949, %v951, %v953
      %v955 = vrot.slane %v616, 2
      %v956 = vsel %vm949, %v953, %v955
      %v957 = vrot.slane %v621, 2
      %v958 = vsel %vm949, %v955, %v957
      %v959 = vrot.slane %v626, 2
      %v960 = vsel %vm949, %v957, %v959
      %v961 = vrot.slane %v631, 2
      %v962 = vsel %vm949, %v959, %v961
      %v963 = vrot.slane %v636, 2
      %v964 = vsel %vm949, %v961, %v963
      %v965 = vrot.slane %v641, 2
      %v966 = vsel %vm949, %v963, %v965
      %v967 = vsel %vm646, %v952, 0
      %v969 = vsel %vm646, %v954, 0
      %v971 = vsel %vm646, %v956, 0
      %v973 = vsel %vm646, %v958, 0
      %v975 = vsel %vm646, %v960, 0
      %v977 = vsel %vm646, %v962, 0
      %v979 = vsel %vm646, %v964, 0
      %v981 = vsel %vm646, %v966, 0
      %v984 = vsel %vm671, %v948, 0
      %986 = vmatprep.subr.mxu0 0.0
      %987 = vmatpush1.msra.mxu0 %v984
      %988 = vmatprep.subr.mxu0 0.0
      %989 = vmatpush1.msra.mxu0 0.0
      %990 = vmatprep.subr.mxu0 0.0
      %991 = vmatpush1.msra.mxu0 0.0
      %992 = vmatprep.subr.mxu0 0.0
      %993 = vmatpush1.msra.mxu0 0.0
      %994 = vmatprep.subr.mxu0 0.0
      %995 = vmatpush1.msra.mxu0 0.0
      %996 = vmatprep.subr.mxu0 0.0
      %997 = vmatpush1.msra.mxu0 0.0
      %998 = vmatprep.subr.mxu0 0.0
      %999 = vmatpush1.msra.mxu0 0.0
      %1000 = vmatprep.subr.mxu0 0.0
      %1001 = vmatpush1.msra.mxu0 0.0
      %1002 = vmatprep.subr.mxu0 0.0
      %1003 = vmatpush1.msra.mxu0 0.0
      %1004 = vmatprep.subr.mxu0 0.0
      %1005 = vmatpush1.msra.mxu0 0.0
      %1006 = vmatprep.subr.mxu0 0.0
      %1007 = vmatpush1.msra.mxu0 0.0
      %1008 = vmatprep.subr.mxu0 0.0
      %1009 = vmatpush1.msra.mxu0 0.0
      %1010 = vmatprep.subr.mxu0 0.0
      %1011 = vmatpush1.msra.mxu0 0.0
      %1012 = vmatprep.subr.mxu0 0.0
      %1013 = vmatpush1.msra.mxu0 0.0
      %1014 = vmatprep.subr.mxu0 0.0
      %1015 = vmatpush1.msra.mxu0 0.0
      %1016 = vmatprep.subr.mxu0 0.0
      %1017 = vmatpush1.msra.mxu0 0.0
      %1018 = vmatprep.subr.mxu0 0.0
      %1019 = vmatpush1.msra.mxu0 0.0
      %1020 = vmatprep.subr.mxu0 0.0
      %1021 = vmatpush1.msra.mxu0 0.0
      %1022 = vmatprep.subr.mxu0 0.0
      %1023 = vmatpush1.msra.mxu0 0.0
      %1024 = vmatprep.subr.mxu0 0.0
      %1025 = vmatpush1.msra.mxu0 0.0
      %1026 = vmatprep.subr.mxu0 0.0
      %1027 = vmatpush1.msra.mxu0 0.0
      %1028 = vmatprep.subr.mxu0 0.0
      %1029 = vmatpush1.msra.mxu0 0.0
      %1030 = vmatprep.subr.mxu0 0.0
      %1031 = vmatpush1.msra.mxu0 0.0
      %1032 = vmatprep.subr.mxu0 0.0
      %1033 = vmatpush1.msra.mxu0 0.0
      %1034 = vmatprep.subr.mxu0 0.0
      %1035 = vmatpush1.msra.mxu0 0.0
      %1036 = vmatprep.subr.mxu0 0.0
      %1037 = vmatpush1.msra.mxu0 0.0
      %1038 = vmatprep.subr.mxu0 0.0
      %1039 = vmatpush1.msra.mxu0 0.0
      %1040 = vmatprep.subr.mxu0 0.0
      %1041 = vmatpush1.msra.mxu0 0.0
      %1042 = vmatprep.subr.mxu0 0.0
      %1043 = vmatpush1.msra.mxu0 0.0
      %1044 = vmatprep.subr.mxu0 0.0
      %1045 = vmatpush1.msra.mxu0 0.0
      %1046 = vmatprep.subr.mxu0 0.0
      %1047 = vmatpush1.msra.mxu0 0.0
      %1048 = vmatprep.subr.mxu0 0.0
      %1049 = vmatpush1.msra.mxu0 0.0
      %1050 = vmatprep.mubr.f32.mxu0 0.0
      %1051 = vmatmul.mubr.f32.gmra.mrb[0].mxu0 %v967
      %v1052 = vpop.f32.mrb[0].mxu0
      %v1053 = vadd.f32 0.0, %v1052
      %v1054 = vpop.f32.mrb[0].mxu0
      %1055 = vmatprep.mubr.f32.mxu0 0.0
      %1056 = vmatmul.mubr.f32.gmra.mrb[0].mxu0 %v969
      %v1057 = vpop.f32.mrb[0].mxu0
      %v1058 = vadd.f32 0.0, %v1057
      %v1059 = vpop.f32.mrb[0].mxu0
      %1060 = vmatprep.mubr.f32.mxu0 0.0
      %1061 = vmatmul.mubr.f32.gmra.mrb[0].mxu0 %v971
      %v1062 = vpop.f32.mrb[0].mxu0
      %v1063 = vadd.f32 0.0, %v1062
      %v1064 = vpop.f32.mrb[0].mxu0
      %1065 = vmatprep.mubr.f32.mxu0 0.0
      %1066 = vmatmul.mubr.f32.gmra.mrb[0].mxu0 %v973
      %v1067 = vpop.f32.mrb[0].mxu0
      %v1068 = vadd.f32 0.0, %v1067
      %v1069 = vpop.f32.mrb[0].mxu0
      %1070 = vmatprep.mubr.f32.mxu0 0.0
      %1071 = vmatmul.mubr.f32.gmra.mrb[0].mxu0 %v975
      %v1072 = vpop.f32.mrb[0].mxu0
      %v1073 = vadd.f32 0.0, %v1072
      %v1074 = vpop.f32.mrb[0].mxu0
      %1075 = vmatprep.mubr.f32.mxu0 0.0
      %1076 = vmatmul.mubr.f32.gmra.mrb[0].mxu0 %v977
      %v1077 = vpop.f32.mrb[0].mxu0
      %v1078 = vadd.f32 0.0, %v1077
      %v1079 = vpop.f32.mrb[0].mxu0
      %1080 = vmatprep.mubr.f32.mxu0 0.0
      %1081 = vmatmul.mubr.f32.gmra.mrb[0].mxu0 %v979
      %v1082 = vpop.f32.mrb[0].mxu0
      %v1083 = vadd.f32 0.0, %v1082
      %v1084 = vpop.f32.mrb[0].mxu0
      %1085 = vmatprep.mubr.f32.mxu0 0.0
      %1086 = vmatmul.mubr.f32.gmra.mrb[0].mxu0 %v981
      %v1087 = vpop.f32.mrb[0].mxu0
      %v1088 = vadd.f32 0.0, %v1087
      %v1089 = vpop.f32.mrb[0].mxu0
      %1090 = vdwg.mxu0
      %v1091 = vadd.f32 %v939, %v1053
      %v1092 = vadd.f32 %v940, %v1058
      %v1093 = vadd.f32 %v941, %v1063
      %v1094 = vadd.f32 %v942, %v1068
      %v1095 = vadd.f32 %v943, %v1073
      %v1096 = vadd.f32 %v944, %v1078
      %v1097 = vadd.f32 %v945, %v1083
      %v1098 = vadd.f32 %v946, %v1088
      %1099 = vst.msk [vmem:[%s251] sm:$0xff] %vm646, %v1091
      %1100 = vst.msk [vmem:[%s251 + $0x8] sm:$0xff] %vm646, %v1092
      %1101 = vst.msk [vmem:[%s251 + $0x10] sm:$0xff] %vm646, %v1093
      %1102 = vst.msk [vmem:[%s251 + $0x18] sm:$0xff] %vm646, %v1094
      %1103 = vst.msk [vmem:[%s251 + $0x20] sm:$0xff] %vm646, %v1095
      %1104 = vst.msk [vmem:[%s251 + $0x28] sm:$0xff] %vm646, %v1096
      %1105 = vst.msk [vmem:[%s251 + $0x30] sm:$0xff] %vm646, %v1097
      %1106 = vst.msk [vmem:[%s251 + $0x38] sm:$0xff] %vm646, %v1098
      %p1107 = scmp.lt.s32.totalorder %s17, 1
      %s1108 = scalar_select %p1107, %s17, 1
      %s1109 = smul.addr %s1108, 8
      %s1110 = smul.addr %s1109, 8
      %s1111 = scalar_lea.vmem %s6, %s1110
      // Predicated region
      $region45: #{spatial_bias.1} parent=43 // pred_check
        %p1112 = pneg %p166
      $region46: #{spatial_bias.1} parent=43 // pred_check_branch
        %1114 = sbr.rel (%p1112) target = $region48
      $region47: #{spatial_bias.1} parent=43 // pred_region
        _
      $region48: #{spatial_bias.1} parent=43 // pred_fallthru
        _
    $region44: #{spatial_bias.1} parent=5 // pred_fallthru
      _
    %p1115 = scmp.le.s32.totalorder 2, %s12
    // Predicated region
    $region49: #{spatial_bias.1} parent=5 // pred_check
      %p1116 = pneg %p1115
    $region50: #{spatial_bias.1} parent=5 // pred_check_branch
      %1118 = sbr.rel (%p1116) target = $region52
    $region51: #{spatial_bias.1} parent=5 // pred_region
      %s1119 = ssub.s32 %s12, 2
      // Predicated region
      $region53: #{spatial_bias.1} parent=51 // pred_check
        %p1120 = pneg %p172
      $region54: #{spatial_bias.1} parent=51 // pred_check_branch
        %1122 = sbr.rel (%p1120) target = $region56
      $region55: #{spatial_bias.1} parent=51 // pred_region
        %p1123 = scmp.lt.s32.totalorder %s18, 1
        %s1124 = scalar_select %p1123, %s18, 1
        %s1125 = smul.addr %s1124, 8
        %s1126 = smul.addr %s1125, 8
        %s1127 = scalar_lea.vmem %s6, %s1126
      $region56: #{spatial_bias.1} parent=51 // pred_fallthru
        _
    $region52: #{spatial_bias.1} parent=5 // pred_fallthru
      _
  $region6: #{spatial_bias.1} parent=0 // loop_footer
    %s16 = sadd.s32 1, %s12
  $region7: #{spatial_bias.1} parent=0 // loop_footer_branch
    %11 = sbr.rel target = $region3
  $region8: #{spatial_bias.1} parent=0 // loop_exit
    _

</llo_original>
